<compile_context>
chip_gen: v7x
topology: tpu7x:2x2x1
jax: 0.10.0
libtpu: 0.0.40
codegen_flags: <defaults>
</compile_context>

<pallas_src>
import jax
import jax.numpy as jnp
from jax.experimental import pallas as pl
from jax.experimental.pallas import tpu as pltpu

H1, H2 = 256, 128     # fc1 / fc2 widths from the module
LANES = 128           # TPU lane width


def mlp_kernel(x_ref, w1q_ref, s1_ref, b1_ref, w2_ref, b2_ref, w3_ref, b3_ref,
               o_ref):
    """Fused fc1+ReLU, fc2+ReLU, fc3 — everything VMEM-resident, one grid step."""
    # fc1: int8 weights dequantized to bf16 (per-column scale folded into the
    # f32 epilogue); bf16 x bf16 on the MXU with f32 accumulation.
    x_bf = x_ref[...].astype(jnp.bfloat16)
    w1_bf = w1q_ref[...].astype(jnp.float32).astype(jnp.bfloat16)  # exact: |q| <= 127
    h1 = jnp.dot(x_bf, w1_bf, preferred_element_type=jnp.float32)
    h1 = jnp.maximum(h1 * s1_ref[...] + b1_ref[...], 0.0)
    # fc2: bf16 weights, f32 bias + ReLU epilogue on the VPU.
    h2 = jnp.dot(h1.astype(jnp.bfloat16), w2_ref[...],
                 preferred_element_type=jnp.float32) + b2_ref[...]
    h2 = jnp.maximum(h2, 0.0)
    # fc3: bf16 x bf16 into the lane-dense (B, 128) padded output slab.
    o_ref[...] = (jnp.dot(h2.astype(jnp.bfloat16), w3_ref[...],
                          preferred_element_type=jnp.float32)
                  + b3_ref[...]).astype(o_ref.dtype)


def prepare_voice_command_params(w1, b1, w2, b2, w3, b3):
    """One-time weight prep — do NOT call per forward (hoisted per review)."""
    K = w1.shape[0]
    assert w1.shape == (K, H1) and w2.shape == (H1, H2) and w3.shape[0] == H2
    C = w3.shape[1]
    CP = ((C + LANES - 1) // LANES) * LANES   # pad fc3 out-dim to full lanes

    # Symmetric per-output-column int8 quantization of W1 (weight-only).
    amax = jnp.max(jnp.abs(w1), axis=0, keepdims=True)                  # (1, H1)
    s1 = jnp.where(amax > 0, amax / 127.0, 1.0).astype(jnp.float32)
    w1q = jnp.clip(jnp.round(w1 / s1), -127, 127).astype(jnp.int8)

    w2_bf = w2.astype(jnp.bfloat16)
    w3p = jnp.zeros((H2, CP), jnp.bfloat16).at[:, :C].set(w3.astype(jnp.bfloat16))
    b3p = jnp.zeros((1, CP), jnp.float32).at[:, :C].set(b3.astype(jnp.float32))

    return dict(
        w1q=w1q, s1=s1, b1=b1.astype(jnp.float32).reshape(1, H1),
        w2=w2_bf, b2=b2.astype(jnp.float32).reshape(1, H2),
        w3=w3p, b3=b3p,
    )


def voice_command_forward(x, params, num_classes):
    """x: (B, K) f32; params from prepare_voice_command_params.
    Returns (B, num_classes) f32 logits."""
    B, K = x.shape
    w1q, s1, b1 = params["w1q"], params["s1"], params["b1"]
    w2, b2 = params["w2"], params["b2"]
    w3, b3 = params["w3"], params["b3"]
    assert w1q.shape == (K, H1)
    CP = w3.shape[1]

    flops = 2 * B * (K * H1 + H1 * H2 + H2 * CP)
    bytes_accessed = (x.size * 4 + w1q.size * 1 + s1.size * 4 + b1.size * 4
                      + w2.size * 2 + b2.size * 4 + w3.size * 2 + b3.size * 4
                      + B * CP * 4)

    out = pl.pallas_call(
        mlp_kernel,
        out_shape=jax.ShapeDtypeStruct((B, CP), jnp.float32),
        grid_spec=pltpu.PrefetchScalarGridSpec(
            num_scalar_prefetch=0,
            grid=(1,),
            in_specs=[
                pl.BlockSpec((B, K), lambda i: (0, 0)),     # x             f32
                pl.BlockSpec((K, H1), lambda i: (0, 0)),    # W1 quantized  int8
                pl.BlockSpec((1, H1), lambda i: (0, 0)),    # W1 col scales f32
                pl.BlockSpec((1, H1), lambda i: (0, 0)),    # b1            f32
                pl.BlockSpec((H1, H2), lambda i: (0, 0)),   # W2            bf16
                pl.BlockSpec((1, H2), lambda i: (0, 0)),    # b2            f32
                pl.BlockSpec((H2, CP), lambda i: (0, 0)),   # W3 (padded)   bf16
                pl.BlockSpec((1, CP), lambda i: (0, 0)),    # b3 (padded)   f32
            ],
            out_specs=pl.BlockSpec((B, CP), lambda i: (0, 0)),
        ),
        compiler_params=pltpu.CompilerParams(
            dimension_semantics=("arbitrary",)),
        cost_estimate=pl.CostEstimate(
            flops=flops, transcendentals=0, bytes_accessed=bytes_accessed),
    )(x, w1q, s1, b1, w2, b2, w3, b3)

    return out[:, :num_classes]


def _ref_forward_f32(x, w1, b1, w2, b2, w3, b3):
    h1 = jnp.maximum(x @ w1 + b1, 0.0)
    h2 = jnp.maximum(h1 @ w2 + b2, 0.0)
    return h2 @ w3 + b3


def _ref_forward_matched(x, params, num_classes):
    """Mirrors the kernel's mixed precision: int8 W1 + bf16 matmul inputs,
    f32 accumulation / epilogue."""
    bf = lambda a: a.astype(jnp.bfloat16).astype(jnp.float32)
    w1deq = params["w1q"].astype(jnp.float32)       # int8 values are exact in bf16
    h1 = jnp.maximum(bf(x) @ w1deq * params["s1"] + params["b1"], 0.0)
    h2 = jnp.maximum(bf(h1) @ bf(params["w2"]) + params["b2"], 0.0)
    out = bf(h2) @ bf(params["w3"]) + params["b3"]
    return out[:, :num_classes]


if __name__ == "__main__":
    # Small shapes consistent with the module's forward (real model uses
    # input_size=44100). Batch is a multiple of 16 so bf16 casts pack cleanly;
    # throughput scales nearly free with B up to a few hundred rows.
    batch, input_size, num_classes = 16, 1024, 4

    key = jax.random.PRNGKey(0)
    kx, k1, k2, k3, kb1, kb2, kb3 = jax.random.split(key, 7)

    x = jax.random.normal(kx, (batch, input_size), dtype=jnp.float32)

    # Deterministic parameter init (Kaiming-ish uniform scale like nn.Linear).
    def init_linear(kw, kb, fan_in, fan_out):
        bound = 1.0 / jnp.sqrt(fan_in)
        w = jax.random.uniform(kw, (fan_in, fan_out), jnp.float32, -bound, bound)
        b = jax.random.uniform(kb, (1, fan_out), jnp.float32, -bound, bound)
        return w, b

    w1, b1 = init_linear(k1, kb1, input_size, H1)
    w2, b2 = init_linear(k2, kb2, H1, H2)
    w3, b3 = init_linear(k3, kb3, H2, num_classes)

    # One-time weight preparation, hoisted out of the forward path.
    params = prepare_voice_command_params(w1, b1, w2, b2, w3, b3)
    params = jax.tree_util.tree_map(jax.block_until_ready, params)

    out = voice_command_forward(x, params, num_classes)
    out = jax.block_until_ready(out)
    assert out.shape == (batch, num_classes)

    # Tight check against a precision-matched reference (int8 W1, bf16 matmuls).
    ref_m = _ref_forward_matched(x, params, num_classes)
    assert jnp.allclose(out, ref_m, atol=2e-2, rtol=2e-2), float(
        jnp.max(jnp.abs(out - ref_m)))

    # Loose sanity check vs. the pure-f32 PyTorch-equivalent reference.
    # (int8/bf16 weight storage slightly changes numerics vs. the f32 module —
    # acceptable for pre-argmax logits.)
    ref_f32 = _ref_forward_f32(x, w1, b1, w2, b2, w3, b3)
    assert jnp.allclose(out, ref_f32, atol=5e-2, rtol=5e-2), float(
        jnp.max(jnp.abs(out - ref_f32)))

    print("KERNEL_OK")
</pallas_src>

<mosaic_0001>
module attributes {stable_mosaic.version = 11 : i64} {
  func.func @mlp_kernel(%arg0: i32, %arg1: memref<16x1024xf32, #tpu.memory_space<vmem>>, %arg2: memref<1024x256xi8, #tpu.memory_space<vmem>>, %arg3: memref<1x256xf32, #tpu.memory_space<vmem>>, %arg4: memref<1x256xf32, #tpu.memory_space<vmem>>, %arg5: memref<256x128xbf16, #tpu.memory_space<vmem>>, %arg6: memref<1x128xf32, #tpu.memory_space<vmem>>, %arg7: memref<128x128xbf16, #tpu.memory_space<vmem>>, %arg8: memref<1x128xf32, #tpu.memory_space<vmem>>, %arg9: memref<16x128xf32, #tpu.memory_space<vmem>>) attributes {dimension_semantics = [#tpu.dimension_semantics<arbitrary>], iteration_bounds = array<i64: 1>, scalar_prefetch = 0 : i64, scratch_operands = 0 : i64, tpu.core_type = #tpu.core_type<tc>, window_params = [{pipeline_mode = #tpu.pipeline_mode<synchronous>, transform_indices = @transform_0, window_bounds = array<i64: 16, 1024>}, {pipeline_mode = #tpu.pipeline_mode<synchronous>, transform_indices = @transform_1, window_bounds = array<i64: 1024, 256>}, {pipeline_mode = #tpu.pipeline_mode<synchronous>, transform_indices = @transform_2, window_bounds = array<i64: 1, 256>}, {pipeline_mode = #tpu.pipeline_mode<synchronous>, transform_indices = @transform_3, window_bounds = array<i64: 1, 256>}, {pipeline_mode = #tpu.pipeline_mode<synchronous>, transform_indices = @transform_4, window_bounds = array<i64: 256, 128>}, {pipeline_mode = #tpu.pipeline_mode<synchronous>, transform_indices = @transform_5, window_bounds = array<i64: 1, 128>}, {pipeline_mode = #tpu.pipeline_mode<synchronous>, transform_indices = @transform_6, window_bounds = array<i64: 128, 128>}, {pipeline_mode = #tpu.pipeline_mode<synchronous>, transform_indices = @transform_7, window_bounds = array<i64: 1, 128>}, {pipeline_mode = #tpu.pipeline_mode<synchronous>, transform_indices = @transform_8, window_bounds = array<i64: 16, 128>}]} {
    %c0 = arith.constant 0 : index
    %c0_0 = arith.constant 0 : index
    %0 = vector.load %arg1[%c0, %c0_0] : memref<16x1024xf32, #tpu.memory_space<vmem>>, vector<16x1024xf32>
    %1 = arith.truncf %0 : vector<16x1024xf32> to vector<16x1024xbf16>
    %c0_1 = arith.constant 0 : index
    %c0_2 = arith.constant 0 : index
    %2 = vector.load %arg2[%c0_1, %c0_2] : memref<1024x256xi8, #tpu.memory_space<vmem>>, vector<1024x256xi8>
    %3 = arith.sitofp %2 : vector<1024x256xi8> to vector<1024x256xf32>
    %4 = arith.truncf %3 : vector<1024x256xf32> to vector<1024x256xbf16>
    %cst = arith.constant dense<0.000000e+00> : vector<16x256xf32>
    %5 = tpu.matmul %1, %4, %cst {dimension_numbers = #tpu.dot_dimension_numbers<[1], [0], [0], [1], [0, 0, 1, 1], [], []>} : vector<16x1024xbf16>, vector<1024x256xbf16>, vector<16x256xf32> -> vector<16x256xf32>
    %c0_3 = arith.constant 0 : index
    %c0_4 = arith.constant 0 : index
    %6 = vector.load %arg3[%c0_3, %c0_4] : memref<1x256xf32, #tpu.memory_space<vmem>>, vector<1x256xf32>
    %7 = vector.broadcast %6 : vector<1x256xf32> to vector<16x256xf32>
    %8 = arith.mulf %5, %7 : vector<16x256xf32>
    %c0_5 = arith.constant 0 : index
    %c0_6 = arith.constant 0 : index
    %9 = vector.load %arg4[%c0_5, %c0_6] : memref<1x256xf32, #tpu.memory_space<vmem>>, vector<1x256xf32>
    %10 = vector.broadcast %9 : vector<1x256xf32> to vector<16x256xf32>
    %11 = arith.addf %8, %10 : vector<16x256xf32>
    %cst_7 = arith.constant 0.000000e+00 : f32
    %12 = vector.broadcast %cst_7 : f32 to vector<16x256xf32>
    %13 = arith.maximumf %11, %12 : vector<16x256xf32>
    %14 = arith.truncf %13 : vector<16x256xf32> to vector<16x256xbf16>
    %c0_8 = arith.constant 0 : index
    %c0_9 = arith.constant 0 : index
    %15 = vector.load %arg5[%c0_8, %c0_9] : memref<256x128xbf16, #tpu.memory_space<vmem>>, vector<256x128xbf16>
    %cst_10 = arith.constant dense<0.000000e+00> : vector<16x128xf32>
    %16 = tpu.matmul %14, %15, %cst_10 {dimension_numbers = #tpu.dot_dimension_numbers<[1], [0], [0], [1], [0, 0, 1, 1], [], []>} : vector<16x256xbf16>, vector<256x128xbf16>, vector<16x128xf32> -> vector<16x128xf32>
    %c0_11 = arith.constant 0 : index
    %c0_12 = arith.constant 0 : index
    %17 = vector.load %arg6[%c0_11, %c0_12] : memref<1x128xf32, #tpu.memory_space<vmem>>, vector<1x128xf32>
    %18 = vector.broadcast %17 : vector<1x128xf32> to vector<16x128xf32>
    %19 = arith.addf %16, %18 : vector<16x128xf32>
    %cst_13 = arith.constant 0.000000e+00 : f32
    %20 = vector.broadcast %cst_13 : f32 to vector<16x128xf32>
    %21 = arith.maximumf %19, %20 : vector<16x128xf32>
    %22 = arith.truncf %21 : vector<16x128xf32> to vector<16x128xbf16>
    %c0_14 = arith.constant 0 : index
    %c0_15 = arith.constant 0 : index
    %23 = vector.load %arg7[%c0_14, %c0_15] : memref<128x128xbf16, #tpu.memory_space<vmem>>, vector<128x128xbf16>
    %cst_16 = arith.constant dense<0.000000e+00> : vector<16x128xf32>
    %24 = tpu.matmul %22, %23, %cst_16 {dimension_numbers = #tpu.dot_dimension_numbers<[1], [0], [0], [1], [0, 0, 1, 1], [], []>} : vector<16x128xbf16>, vector<128x128xbf16>, vector<16x128xf32> -> vector<16x128xf32>
    %c0_17 = arith.constant 0 : index
    %c0_18 = arith.constant 0 : index
    %25 = vector.load %arg8[%c0_17, %c0_18] : memref<1x128xf32, #tpu.memory_space<vmem>>, vector<1x128xf32>
    %26 = vector.broadcast %25 : vector<1x128xf32> to vector<16x128xf32>
    %27 = arith.addf %24, %26 : vector<16x128xf32>
    %c0_19 = arith.constant 0 : index
    %c0_20 = arith.constant 0 : index
    %28 = vector.load %arg9[%c0_19, %c0_20] : memref<16x128xf32, #tpu.memory_space<vmem>>, vector<16x128xf32>
    tpu.vector_store %arg9[%c0_19, %c0_20], %27 {strides = array<i32>} : memref<16x128xf32, #tpu.memory_space<vmem>>, vector<16x128xf32>,
    return
  }
  func.func @transform_0(%arg0: i32) -> (i32, i32) {
    %c0_i32 = arith.constant 0 : i32
    %c0_i32_0 = arith.constant 0 : i32
    %c0_i32_1 = arith.constant 0 : i32
    return %c0_i32, %c0_i32_0 : i32, i32
  }
  func.func @transform_1(%arg0: i32) -> (i32, i32) {
    %c0_i32 = arith.constant 0 : i32
    %c0_i32_0 = arith.constant 0 : i32
    %c0_i32_1 = arith.constant 0 : i32
    return %c0_i32, %c0_i32_0 : i32, i32
  }
  func.func @transform_2(%arg0: i32) -> (i32, i32) {
    %c0_i32 = arith.constant 0 : i32
    %c0_i32_0 = arith.constant 0 : i32
    %c0_i32_1 = arith.constant 0 : i32
    return %c0_i32, %c0_i32_0 : i32, i32
  }
  func.func @transform_3(%arg0: i32) -> (i32, i32) {
    %c0_i32 = arith.constant 0 : i32
    %c0_i32_0 = arith.constant 0 : i32
    %c0_i32_1 = arith.constant 0 : i32
    return %c0_i32, %c0_i32_0 : i32, i32
  }
  func.func @transform_4(%arg0: i32) -> (i32, i32) {
    %c0_i32 = arith.constant 0 : i32
    %c0_i32_0 = arith.constant 0 : i32
    %c0_i32_1 = arith.constant 0 : i32
    return %c0_i32, %c0_i32_0 : i32, i32
  }
  func.func @transform_5(%arg0: i32) -> (i32, i32) {
    %c0_i32 = arith.constant 0 : i32
    %c0_i32_0 = arith.constant 0 : i32
    %c0_i32_1 = arith.constant 0 : i32
    return %c0_i32, %c0_i32_0 : i32, i32
  }
  func.func @transform_6(%arg0: i32) -> (i32, i32) {
    %c0_i32 = arith.constant 0 : i32
    %c0_i32_0 = arith.constant 0 : i32
    %c0_i32_1 = arith.constant 0 : i32
    return %c0_i32, %c0_i32_0 : i32, i32
  }
  func.func @transform_7(%arg0: i32) -> (i32, i32) {
    %c0_i32 = arith.constant 0 : i32
    %c0_i32_0 = arith.constant 0 : i32
    %c0_i32_1 = arith.constant 0 : i32
    return %c0_i32, %c0_i32_0 : i32, i32
  }
  func.func @transform_8(%arg0: i32) -> (i32, i32) {
    %c0_i32 = arith.constant 0 : i32
    %c0_i32_0 = arith.constant 0 : i32
    %c0_i32_1 = arith.constant 0 : i32
    return %c0_i32, %c0_i32_0 : i32, i32
  }
}

</mosaic_0001>

<llo_original>
// kernel: tpu_custom_call.1
$region0: #{tpu_custom_call.1}
  #allocation0 [shape = 'u32[]', space=smem, size = 0x4, offset = 0x4, fixed_abs, tag = 'smem constant byte address 0x4 - core index']
  #allocation1 [shape = 'u32[144,128]{1,0:T(1,128)}', space=vmem, size = 0x12000, scoped, tag = 'internal scratch']
  %s0 = inlined_call_operand.hbm [shape: f32[16,1024], index: 0, kind: input, shape index: {}]
  %s1 = inlined_call_operand.hbm [shape: s8[1024,256], index: 1, kind: input, shape index: {}]
  %s2 = inlined_call_operand.vmem [shape: f32[1,256], index: 2, kind: input, shape index: {}]
  %s3 = inlined_call_operand.vmem [shape: f32[1,256], index: 3, kind: input, shape index: {}]
  %s4 = inlined_call_operand.hbm [shape: bf16[256,128], index: 4, kind: input, shape index: {}]
  %s5 = inlined_call_operand.vmem [shape: f32[1,128], index: 5, kind: input, shape index: {}]
  %s6 = inlined_call_operand.hbm [shape: bf16[128,128], index: 6, kind: input, shape index: {}]
  %s7 = inlined_call_operand.vmem [shape: f32[1,128], index: 7, kind: input, shape index: {}]
  %s8 = inlined_call_operand.hbm [shape: f32[16,128], index: 8, kind: output, shape index: {}]
  %s9 = sld [smem:[#allocation0]]
  $region58: #{tpu_custom_call.1} parent=0
    _
  %s11 = ssub.s32 1, %s9
  %s12 = scalar_select 0, %s11, %s9
  $region1: #{tpu_custom_call.1} parent=0
    #allocation2 [shape = 'u8[65536]{0}', space=vmem, size = 0x10000, scoped, tag = 'input window, operand 0, single buffered']
    #allocation3 [shape = 's32[1]{0}', space=sflag, size = 0x4, scoped, tag = 'scoped memory for tpu_custom_call.1']
    #allocation4 [shape = 's32[1]{0}', space=sflag, size = 0x4, scoped, tag = 'scoped memory for tpu_custom_call.1']
    #allocation5 [shape = 'u8[262144]{0}', space=vmem, size = 0x40000, scoped, tag = 'input window, operand 1, single buffered']
    #allocation6 [shape = 's32[1]{0}', space=sflag, size = 0x4, scoped, tag = 'scoped memory for tpu_custom_call.1']
    #allocation7 [shape = 'u8[65536]{0}', space=vmem, size = 0x10000, scoped, tag = 'input window, operand 4, single buffered']
    #allocation8 [shape = 'u8[32768]{0}', space=vmem, size = 0x8000, scoped, tag = 'input window, operand 6, single buffered']
    #allocation9 [shape = 's32[1]{0}', space=sflag, size = 0x4, scoped, tag = 'scoped memory for tpu_custom_call.1']
    #allocation10 [shape = 'u8[8192]{0}', space=vmem, size = 0x2000, scoped, tag = 'output window, operand 0, single buffered']
    %13 = vsyncpa [#allocation3], 0
    %14 = vsyncpa [#allocation6], 0
    %15 = vsyncpa [#allocation9], 0
    %16 = vsyncpa [#allocation4], 0
    // Predicated region
    $region2: #{tpu_custom_call.1} parent=1 // pred_check
      _
    $region3: #{tpu_custom_call.1} parent=1 // pred_check_branch
      %18 = sbr.rel (0) target = $region5
    $region4: #{tpu_custom_call.1} parent=1 // pred_region
      %s20 = ssub.s32 2048, 2048
      %21 = vsyncadd [#allocation3], %s20
      %s22 = sshll.u32 [#allocation2], 4
      %s23 = int_to_ptr.vmem [resolvable:$true] %s22
      %28 = dma.hbm_to_vmem [thread:$0]  %s0, 2048, %s23, [#allocation3], 1024, 1024, 64
    $region5: #{tpu_custom_call.1} parent=1 // pred_fallthru
      _
    // Predicated region
    $region6: #{tpu_custom_call.1} parent=1 // pred_check
      _
    $region7: #{tpu_custom_call.1} parent=1 // pred_check_branch
      %30 = sbr.rel (0) target = $region9
    $region8: #{tpu_custom_call.1} parent=1 // pred_region
      %s32 = ssub.s32 8192, 8192
      %33 = vsyncadd [#allocation6], %s32
      %s34 = sshll.u32 [#allocation5], 4
      %s35 = int_to_ptr.vmem [resolvable:$true] %s34
      %40 = dma.hbm_to_vmem [thread:$0]  %s1, 8192, %s35, [#allocation6], 256, 256, 16
    $region9: #{tpu_custom_call.1} parent=1 // pred_fallthru
      _
    // Predicated region
    $region10: #{tpu_custom_call.1} parent=1 // pred_check
      _
    $region11: #{tpu_custom_call.1} parent=1 // pred_check_branch
      %42 = sbr.rel (0) target = $region13
    $region12: #{tpu_custom_call.1} parent=1 // pred_region
      _
    $region13: #{tpu_custom_call.1} parent=1 // pred_fallthru
      _
    // Predicated region
    $region14: #{tpu_custom_call.1} parent=1 // pred_check
      _
    $region15: #{tpu_custom_call.1} parent=1 // pred_check_branch
      %44 = sbr.rel (0) target = $region17
    $region16: #{tpu_custom_call.1} parent=1 // pred_region
      _
    $region17: #{tpu_custom_call.1} parent=1 // pred_fallthru
      _
    // Predicated region
    $region18: #{tpu_custom_call.1} parent=1 // pred_check
      _
    $region19: #{tpu_custom_call.1} parent=1 // pred_check_branch
      %46 = sbr.rel (0) target = $region21
    $region20: #{tpu_custom_call.1} parent=1 // pred_region
      %s48 = ssub.s32 2048, 2048
      %49 = vsyncadd [#allocation6], %s48
      %s50 = sshll.u32 [#allocation7], 4
      %s51 = int_to_ptr.vmem [resolvable:$true] %s50
      %56 = dma.hbm_to_vmem [thread:$0]  %s4, 2048, %s51, [#allocation6], 64, 64, 4
    $region21: #{tpu_custom_call.1} parent=1 // pred_fallthru
      _
    // Predicated region
    $region22: #{tpu_custom_call.1} parent=1 // pred_check
      _
    $region23: #{tpu_custom_call.1} parent=1 // pred_check_branch
      %58 = sbr.rel (0) target = $region25
    $region24: #{tpu_custom_call.1} parent=1 // pred_region
      _
    $region25: #{tpu_custom_call.1} parent=1 // pred_fallthru
      _
    // Predicated region
    $region26: #{tpu_custom_call.1} parent=1 // pred_check
      _
    $region27: #{tpu_custom_call.1} parent=1 // pred_check_branch
      %60 = sbr.rel (0) target = $region29
    $region28: #{tpu_custom_call.1} parent=1 // pred_region
      %s62 = ssub.s32 1024, 1024
      %63 = vsyncadd [#allocation9], %s62
      %s64 = sshll.u32 [#allocation8], 4
      %s65 = int_to_ptr.vmem [resolvable:$true] %s64
      %70 = dma.hbm_to_vmem [thread:$0]  %s6, 1024, %s65, [#allocation9], 64, 64, 4
    $region29: #{tpu_custom_call.1} parent=1 // pred_fallthru
      _
    // Predicated region
    $region30: #{tpu_custom_call.1} parent=1 // pred_check
      _
    $region31: #{tpu_custom_call.1} parent=1 // pred_check_branch
      %72 = sbr.rel (0) target = $region33
    $region32: #{tpu_custom_call.1} parent=1 // pred_region
      _
    $region33: #{tpu_custom_call.1} parent=1 // pred_fallthru
      _
    // Predicated region
    $region34: #{tpu_custom_call.1} parent=1 // pred_check
      _
    $region35: #{tpu_custom_call.1} parent=1 // pred_check_branch
      %74 = sbr.rel (0) target = $region37
    $region36: #{tpu_custom_call.1} parent=1 // pred_region
      %75 = dma.done [#allocation3], 2048
    $region37: #{tpu_custom_call.1} parent=1 // pred_fallthru
      _
    // Predicated region
    $region38: #{tpu_custom_call.1} parent=1 // pred_check
      _
    $region39: #{tpu_custom_call.1} parent=1 // pred_check_branch
      %77 = sbr.rel (0) target = $region41
    $region40: #{tpu_custom_call.1} parent=1 // pred_region
      %78 = dma.done [#allocation6], 8192
    $region41: #{tpu_custom_call.1} parent=1 // pred_fallthru
      _
    // Predicated region
    $region42: #{tpu_custom_call.1} parent=1 // pred_check
      _
    $region43: #{tpu_custom_call.1} parent=1 // pred_check_branch
      %80 = sbr.rel (0) target = $region45
    $region44: #{tpu_custom_call.1} parent=1 // pred_region
      %81 = dma.done [#allocation6], 2048
    $region45: #{tpu_custom_call.1} parent=1 // pred_fallthru
      _
    // Predicated region
    $region46: #{tpu_custom_call.1} parent=1 // pred_check
      _
    $region47: #{tpu_custom_call.1} parent=1 // pred_check_branch
      %83 = sbr.rel (0) target = $region49
    $region48: #{tpu_custom_call.1} parent=1 // pred_region
      %84 = dma.done [#allocation9], 1024
    $region49: #{tpu_custom_call.1} parent=1 // pred_fallthru
      _
    %v86 = vld [vmem:[#allocation2] sm:$0xff]
    %v87 = vld [vmem:[#allocation2 + $0x8] sm:$0xff]
    %v88 = vld [vmem:[#allocation2 + $0x10] sm:$0xff]
    %v89 = vld [vmem:[#allocation2 + $0x18] sm:$0xff]
    %v90 = vld [vmem:[#allocation2 + $0x20] sm:$0xff]
    %v91 = vld [vmem:[#allocation2 + $0x28] sm:$0xff]
    %v92 = vld [vmem:[#allocation2 + $0x30] sm:$0xff]
    %v93 = vld [vmem:[#allocation2 + $0x38] sm:$0xff]
    %v94 = vld [vmem:[#allocation2 + $0x40] sm:$0xff]
    %v95 = vld [vmem:[#allocation2 + $0x48] sm:$0xff]
    %v96 = vld [vmem:[#allocation2 + $0x50] sm:$0xff]
    %v97 = vld [vmem:[#allocation2 + $0x58] sm:$0xff]
    %v98 = vld [vmem:[#allocation2 + $0x60] sm:$0xff]
    %v99 = vld [vmem:[#allocation2 + $0x68] sm:$0xff]
    %v100 = vld [vmem:[#allocation2 + $0x70] sm:$0xff]
    %v101 = vld [vmem:[#allocation2 + $0x78] sm:$0xff]
    %v102 = vpack.c.bf16 %v94, %v86
    %v103 = vpack.c.bf16 %v95, %v87
    %v104 = vpack.c.bf16 %v96, %v88
    %v105 = vpack.c.bf16 %v97, %v89
    %v106 = vpack.c.bf16 %v98, %v90
    %v107 = vpack.c.bf16 %v99, %v91
    %v108 = vpack.c.bf16 %v100, %v92
    %v109 = vpack.c.bf16 %v101, %v93
    %v110 = vld [vmem:[#allocation5] sm:$0xff]
    %v111 = vld [vmem:[#allocation5 + $0x8] sm:$0xff]
    %v112 = vld [vmem:[#allocation5 + $0x10] sm:$0xff]
    %v113 = vld [vmem:[#allocation5 + $0x18] sm:$0xff]
    %v114 = vld [vmem:[#allocation5 + $0x20] sm:$0xff]
    %v115 = vld [vmem:[#allocation5 + $0x28] sm:$0xff]
    %v116 = vld [vmem:[#allocation5 + $0x30] sm:$0xff]
    %v117 = vld [vmem:[#allocation5 + $0x38] sm:$0xff]
    %v118 = vld [vmem:[#allocation5 + $0x40] sm:$0xff]
    %v119 = vld [vmem:[#allocation5 + $0x48] sm:$0xff]
    %v120 = vld [vmem:[#allocation5 + $0x50] sm:$0xff]
    %v121 = vld [vmem:[#allocation5 + $0x58] sm:$0xff]
    %v122 = vld [vmem:[#allocation5 + $0x60] sm:$0xff]
    %v123 = vld [vmem:[#allocation5 + $0x68] sm:$0xff]
    %v124 = vld [vmem:[#allocation5 + $0x70] sm:$0xff]
    %v125 = vld [vmem:[#allocation5 + $0x78] sm:$0xff]
    %v126 = vld [vmem:[#allocation5 + $0x80] sm:$0xff]
    %v127 = vld [vmem:[#allocation5 + $0x88] sm:$0xff]
    %v128 = vld [vmem:[#allocation5 + $0x90] sm:$0xff]
    %v129 = vld [vmem:[#allocation5 + $0x98] sm:$0xff]
    %v130 = vld [vmem:[#allocation5 + $0xa0] sm:$0xff]
    %v131 = vld [vmem:[#allocation5 + $0xa8] sm:$0xff]
    %v132 = vld [vmem:[#allocation5 + $0xb0] sm:$0xff]
    %v133 = vld [vmem:[#allocation5 + $0xb8] sm:$0xff]
    %v134 = vld [vmem:[#allocation5 + $0xc0] sm:$0xff]
    %v135 = vld [vmem:[#allocation5 + $0xc8] sm:$0xff]
    %v136 = vld [vmem:[#allocation5 + $0xd0] sm:$0xff]
    %v137 = vld [vmem:[#allocation5 + $0xd8] sm:$0xff]
    %v138 = vld [vmem:[#allocation5 + $0xe0] sm:$0xff]
    %v139 = vld [vmem:[#allocation5 + $0xe8] sm:$0xff]
    %v140 = vld [vmem:[#allocation5 + $0xf0] sm:$0xff]
    %v141 = vld [vmem:[#allocation5 + $0xf8] sm:$0xff]
    %v142 = vld [vmem:[#allocation5 + $0x100] sm:$0xff]
    %v143 = vld [vmem:[#allocation5 + $0x108] sm:$0xff]
    %v144 = vld [vmem:[#allocation5 + $0x110] sm:$0xff]
    %v145 = vld [vmem:[#allocation5 + $0x118] sm:$0xff]
    %v146 = vld [vmem:[#allocation5 + $0x120] sm:$0xff]
    %v147 = vld [vmem:[#allocation5 + $0x128] sm:$0xff]
    %v148 = vld [vmem:[#allocation5 + $0x130] sm:$0xff]
    %v149 = vld [vmem:[#allocation5 + $0x138] sm:$0xff]
    %v150 = vld [vmem:[#allocation5 + $0x140] sm:$0xff]
    %v151 = vld [vmem:[#allocation5 + $0x148] sm:$0xff]
    %v152 = vld [vmem:[#allocation5 + $0x150] sm:$0xff]
    %v153 = vld [vmem:[#allocation5 + $0x158] sm:$0xff]
    %v154 = vld [vmem:[#allocation5 + $0x160] sm:$0xff]
    %v155 = vld [vmem:[#allocation5 + $0x168] sm:$0xff]
    %v156 = vld [vmem:[#allocation5 + $0x170] sm:$0xff]
    %v157 = vld [vmem:[#allocation5 + $0x178] sm:$0xff]
    %v158 = vld [vmem:[#allocation5 + $0x180] sm:$0xff]
    %v159 = vld [vmem:[#allocation5 + $0x188] sm:$0xff]
    %v160 = vld [vmem:[#allocation5 + $0x190] sm:$0xff]
    %v161 = vld [vmem:[#allocation5 + $0x198] sm:$0xff]
    %v162 = vld [vmem:[#allocation5 + $0x1a0] sm:$0xff]
    %v163 = vld [vmem:[#allocation5 + $0x1a8] sm:$0xff]
    %v164 = vld [vmem:[#allocation5 + $0x1b0] sm:$0xff]
    %v165 = vld [vmem:[#allocation5 + $0x1b8] sm:$0xff]
    %v166 = vld [vmem:[#allocation5 + $0x1c0] sm:$0xff]
    %v167 = vld [vmem:[#allocation5 + $0x1c8] sm:$0xff]
    %v168 = vld [vmem:[#allocation5 + $0x1d0] sm:$0xff]
    %v169 = vld [vmem:[#allocation5 + $0x1d8] sm:$0xff]
    %v170 = vld [vmem:[#allocation5 + $0x1e0] sm:$0xff]
    %v171 = vld [vmem:[#allocation5 + $0x1e8] sm:$0xff]
    %v172 = vld [vmem:[#allocation5 + $0x1f0] sm:$0xff]
    %v173 = vld [vmem:[#allocation5 + $0x1f8] sm:$0xff]
    %v174 = vunpack.c.l.s8.bf16 %v110
    %v175 = vunpack.c.l.s8.bf16 %v111
    %v176 = vunpack.c.h.s8.bf16 %v110
    %v177 = vunpack.c.h.s8.bf16 %v111
    %v178 = vunpack.c.l.s8.bf16 %v112
    %v179 = vunpack.c.l.s8.bf16 %v113
    %v180 = vunpack.c.h.s8.bf16 %v112
    %v181 = vunpack.c.h.s8.bf16 %v113
    %v182 = vunpack.c.l.s8.bf16 %v114
    %v183 = vunpack.c.l.s8.bf16 %v115
    %v184 = vunpack.c.h.s8.bf16 %v114
    %v185 = vunpack.c.h.s8.bf16 %v115
    %v186 = vunpack.c.l.s8.bf16 %v116
    %v187 = vunpack.c.l.s8.bf16 %v117
    %v188 = vunpack.c.h.s8.bf16 %v116
    %v189 = vunpack.c.h.s8.bf16 %v117
    %v190 = vunpack.c.l.s8.bf16 %v118
    %v191 = vunpack.c.l.s8.bf16 %v119
    %v192 = vunpack.c.h.s8.bf16 %v118
    %v193 = vunpack.c.h.s8.bf16 %v119
    %v194 = vunpack.c.l.s8.bf16 %v120
    %v195 = vunpack.c.l.s8.bf16 %v121
    %v196 = vunpack.c.h.s8.bf16 %v120
    %v197 = vunpack.c.h.s8.bf16 %v121
    %v198 = vunpack.c.l.s8.bf16 %v122
    %v199 = vunpack.c.l.s8.bf16 %v123
    %v200 = vunpack.c.h.s8.bf16 %v122
    %v201 = vunpack.c.h.s8.bf16 %v123
    %v202 = vunpack.c.l.s8.bf16 %v124
    %v203 = vunpack.c.l.s8.bf16 %v125
    %v204 = vunpack.c.h.s8.bf16 %v124
    %v205 = vunpack.c.h.s8.bf16 %v125
    %v206 = vunpack.c.l.s8.bf16 %v126
    %v207 = vunpack.c.l.s8.bf16 %v127
    %v208 = vunpack.c.h.s8.bf16 %v126
    %v209 = vunpack.c.h.s8.bf16 %v127
    %v210 = vunpack.c.l.s8.bf16 %v128
    %v211 = vunpack.c.l.s8.bf16 %v129
    %v212 = vunpack.c.h.s8.bf16 %v128
    %v213 = vunpack.c.h.s8.bf16 %v129
    %v214 = vunpack.c.l.s8.bf16 %v130
    %v215 = vunpack.c.l.s8.bf16 %v131
    %v216 = vunpack.c.h.s8.bf16 %v130
    %v217 = vunpack.c.h.s8.bf16 %v131
    %v218 = vunpack.c.l.s8.bf16 %v132
    %v219 = vunpack.c.l.s8.bf16 %v133
    %v220 = vunpack.c.h.s8.bf16 %v132
    %v221 = vunpack.c.h.s8.bf16 %v133
    %v222 = vunpack.c.l.s8.bf16 %v134
    %v223 = vunpack.c.l.s8.bf16 %v135
    %v224 = vunpack.c.h.s8.bf16 %v134
    %v225 = vunpack.c.h.s8.bf16 %v135
    %v226 = vunpack.c.l.s8.bf16 %v136
    %v227 = vunpack.c.l.s8.bf16 %v137
    %v228 = vunpack.c.h.s8.bf16 %v136
    %v229 = vunpack.c.h.s8.bf16 %v137
    %v230 = vunpack.c.l.s8.bf16 %v138
    %v231 = vunpack.c.l.s8.bf16 %v139
    %v232 = vunpack.c.h.s8.bf16 %v138
    %v233 = vunpack.c.h.s8.bf16 %v139
    %v234 = vunpack.c.l.s8.bf16 %v140
    %v235 = vunpack.c.l.s8.bf16 %v141
    %v236 = vunpack.c.h.s8.bf16 %v140
    %v237 = vunpack.c.h.s8.bf16 %v141
    %v238 = vunpack.c.l.s8.bf16 %v142
    %v239 = vunpack.c.l.s8.bf16 %v143
    %v240 = vunpack.c.h.s8.bf16 %v142
    %v241 = vunpack.c.h.s8.bf16 %v143
    %v242 = vunpack.c.l.s8.bf16 %v144
    %v243 = vunpack.c.l.s8.bf16 %v145
    %v244 = vunpack.c.h.s8.bf16 %v144
    %v245 = vunpack.c.h.s8.bf16 %v145
    %v246 = vunpack.c.l.s8.bf16 %v146
    %v247 = vunpack.c.l.s8.bf16 %v147
    %v248 = vunpack.c.h.s8.bf16 %v146
    %v249 = vunpack.c.h.s8.bf16 %v147
    %v250 = vunpack.c.l.s8.bf16 %v148
    %v251 = vunpack.c.l.s8.bf16 %v149
    %v252 = vunpack.c.h.s8.bf16 %v148
    %v253 = vunpack.c.h.s8.bf16 %v149
    %v254 = vunpack.c.l.s8.bf16 %v150
    %v255 = vunpack.c.l.s8.bf16 %v151
    %v256 = vunpack.c.h.s8.bf16 %v150
    %v257 = vunpack.c.h.s8.bf16 %v151
    %v258 = vunpack.c.l.s8.bf16 %v152
    %v259 = vunpack.c.l.s8.bf16 %v153
    %v260 = vunpack.c.h.s8.bf16 %v152
    %v261 = vunpack.c.h.s8.bf16 %v153
    %v262 = vunpack.c.l.s8.bf16 %v154
    %v263 = vunpack.c.l.s8.bf16 %v155
    %v264 = vunpack.c.h.s8.bf16 %v154
    %v265 = vunpack.c.h.s8.bf16 %v155
    %v266 = vunpack.c.l.s8.bf16 %v156
    %v267 = vunpack.c.l.s8.bf16 %v157
    %v268 = vunpack.c.h.s8.bf16 %v156
    %v269 = vunpack.c.h.s8.bf16 %v157
    %v270 = vunpack.c.l.s8.bf16 %v158
    %v271 = vunpack.c.l.s8.bf16 %v159
    %v272 = vunpack.c.h.s8.bf16 %v158
    %v273 = vunpack.c.h.s8.bf16 %v159
    %v274 = vunpack.c.l.s8.bf16 %v160
    %v275 = vunpack.c.l.s8.bf16 %v161
    %v276 = vunpack.c.h.s8.bf16 %v160
    %v277 = vunpack.c.h.s8.bf16 %v161
    %v278 = vunpack.c.l.s8.bf16 %v162
    %v279 = vunpack.c.l.s8.bf16 %v163
    %v280 = vunpack.c.h.s8.bf16 %v162
    %v281 = vunpack.c.h.s8.bf16 %v163
    %v282 = vunpack.c.l.s8.bf16 %v164
    %v283 = vunpack.c.l.s8.bf16 %v165
    %v284 = vunpack.c.h.s8.bf16 %v164
    %v285 = vunpack.c.h.s8.bf16 %v165
    %v286 = vunpack.c.l.s8.bf16 %v166
    %v287 = vunpack.c.l.s8.bf16 %v167
    %v288 = vunpack.c.h.s8.bf16 %v166
    %v289 = vunpack.c.h.s8.bf16 %v167
    %v290 = vunpack.c.l.s8.bf16 %v168
    %v291 = vunpack.c.l.s8.bf16 %v169
    %v292 = vunpack.c.h.s8.bf16 %v168
    %v293 = vunpack.c.h.s8.bf16 %v169
    %v294 = vunpack.c.l.s8.bf16 %v170
    %v295 = vunpack.c.l.s8.bf16 %v171
    %v296 = vunpack.c.h.s8.bf16 %v170
    %v297 = vunpack.c.h.s8.bf16 %v171
    %v298 = vunpack.c.l.s8.bf16 %v172
    %v299 = vunpack.c.l.s8.bf16 %v173
    %v300 = vunpack.c.h.s8.bf16 %v172
    %v301 = vunpack.c.h.s8.bf16 %v173
    %302 = vmatprep.subr.bf16.mxu0 %v175
    %303 = vmatpush1.bf16.msra.mxu0 %v174
    %304 = vmatprep.subr.bf16.mxu0 %v177
    %305 = vmatpush1.bf16.msra.mxu0 %v176
    %306 = vmatprep.subr.bf16.mxu0 %v179
    %307 = vmatpush1.bf16.msra.mxu0 %v178
    %308 = vmatprep.subr.bf16.mxu0 %v181
    %309 = vmatpush1.bf16.msra.mxu0 %v180
    %310 = vmatprep.subr.bf16.mxu0 %v183
    %311 = vmatpush1.bf16.msra.mxu0 %v182
    %312 = vmatprep.subr.bf16.mxu0 %v185
    %313 = vmatpush1.bf16.msra.mxu0 %v184
    %314 = vmatprep.subr.bf16.mxu0 %v187
    %315 = vmatpush1.bf16.msra.mxu0 %v186
    %316 = vmatprep.subr.bf16.mxu0 %v189
    %317 = vmatpush1.bf16.msra.mxu0 %v188
    %318 = vmatprep.subr.bf16.mxu0 %v191
    %319 = vmatpush1.bf16.msra.mxu0 %v190
    %320 = vmatprep.subr.bf16.mxu0 %v193
    %321 = vmatpush1.bf16.msra.mxu0 %v192
    %322 = vmatprep.subr.bf16.mxu0 %v195
    %323 = vmatpush1.bf16.msra.mxu0 %v194
    %324 = vmatprep.subr.bf16.mxu0 %v197
    %325 = vmatpush1.bf16.msra.mxu0 %v196
    %326 = vmatprep.subr.bf16.mxu0 %v199
    %327 = vmatpush1.bf16.msra.mxu0 %v198
    %328 = vmatprep.subr.bf16.mxu0 %v201
    %329 = vmatpush1.bf16.msra.mxu0 %v200
    %330 = vmatprep.subr.bf16.mxu0 %v203
    %331 = vmatpush1.bf16.msra.mxu0 %v202
    %332 = vmatprep.subr.bf16.mxu0 %v205
    %333 = vmatpush1.bf16.msra.mxu0 %v204
    %334 = vmatprep.mubr.bf16.mxu0 %v103
    %335 = vmatmul.mubr.bf16.gmra.mrb[0].mxu0 %v102
    %v336 = vpop.f32.mrb[0].mxu0
    %v337 = vadd.f32 0.0, %v336
    %v338 = vpop.f32.mrb[0].mxu0
    %v339 = vadd.f32 0.0, %v338
    %v340 = vpop.f32.mrb[0].mxu0
    %v341 = vadd.f32 0.0, %v340
    %v342 = vpop.f32.mrb[0].mxu0
    %v343 = vadd.f32 0.0, %v342
    %344 = vdwg.mxu0
    %345 = vmatprep.subr.bf16.mxu0 %v207
    %346 = vmatpush1.bf16.msra.mxu0 %v206
    %347 = vmatprep.subr.bf16.mxu0 %v209
    %348 = vmatpush1.bf16.msra.mxu0 %v208
    %349 = vmatprep.subr.bf16.mxu0 %v211
    %350 = vmatpush1.bf16.msra.mxu0 %v210
    %351 = vmatprep.subr.bf16.mxu0 %v213
    %352 = vmatpush1.bf16.msra.mxu0 %v212
    %353 = vmatprep.subr.bf16.mxu0 %v215
    %354 = vmatpush1.bf16.msra.mxu0 %v214
    %355 = vmatprep.subr.bf16.mxu0 %v217
    %356 = vmatpush1.bf16.msra.mxu0 %v216
    %357 = vmatprep.subr.bf16.mxu0 %v219
    %358 = vmatpush1.bf16.msra.mxu0 %v218
    %359 = vmatprep.subr.bf16.mxu0 %v221
    %360 = vmatpush1.bf16.msra.mxu0 %v220
    %361 = vmatprep.subr.bf16.mxu0 %v223
    %362 = vmatpush1.bf16.msra.mxu0 %v222
    %363 = vmatprep.subr.bf16.mxu0 %v225
    %364 = vmatpush1.bf16.msra.mxu0 %v224
    %365 = vmatprep.subr.bf16.mxu0 %v227
    %366 = vmatpush1.bf16.msra.mxu0 %v226
    %367 = vmatprep.subr.bf16.mxu0 %v229
    %368 = vmatpush1.bf16.msra.mxu0 %v228
    %369 = vmatprep.subr.bf16.mxu0 %v231
    %370 = vmatpush1.bf16.msra.mxu0 %v230
    %371 = vmatprep.subr.bf16.mxu0 %v233
    %372 = vmatpush1.bf16.msra.mxu0 %v232
    %373 = vmatprep.subr.bf16.mxu0 %v235
    %374 = vmatpush1.bf16.msra.mxu0 %v234
    %375 = vmatprep.subr.bf16.mxu0 %v237
    %376 = vmatpush1.bf16.msra.mxu0 %v236
    %377 = vmatprep.mubr.bf16.mxu0 %v105
    %378 = vmatmul.mubr.bf16.gmra.mrb[0].mxu0 %v104
    %v379 = vpop.f32.mrb[0].mxu0
    %v380 = vadd.f32 %v337, %v379
    %v381 = vpop.f32.mrb[0].mxu0
    %v382 = vadd.f32 %v339, %v381
    %v383 = vpop.f32.mrb[0].mxu0
    %v384 = vadd.f32 %v341, %v383
    %v385 = vpop.f32.mrb[0].mxu0
    %v386 = vadd.f32 %v343, %v385
    %387 = vdwg.mxu0
    %388 = vmatprep.subr.bf16.mxu0 %v239
    %389 = vmatpush1.bf16.msra.mxu0 %v238
    %390 = vmatprep.subr.bf16.mxu0 %v241
    %391 = vmatpush1.bf16.msra.mxu0 %v240
    %392 = vmatprep.subr.bf16.mxu0 %v243
    %393 = vmatpush1.bf16.msra.mxu0 %v242
    %394 = vmatprep.subr.bf16.mxu0 %v245
    %395 = vmatpush1.bf16.msra.mxu0 %v244
    %396 = vmatprep.subr.bf16.mxu0 %v247
    %397 = vmatpush1.bf16.msra.mxu0 %v246
    %398 = vmatprep.subr.bf16.mxu0 %v249
    %399 = vmatpush1.bf16.msra.mxu0 %v248
    %400 = vmatprep.subr.bf16.mxu0 %v251
    %401 = vmatpush1.bf16.msra.mxu0 %v250
    %402 = vmatprep.subr.bf16.mxu0 %v253
    %403 = vmatpush1.bf16.msra.mxu0 %v252
    %404 = vmatprep.subr.bf16.mxu0 %v255
    %405 = vmatpush1.bf16.msra.mxu0 %v254
    %406 = vmatprep.subr.bf16.mxu0 %v257
    %407 = vmatpush1.bf16.msra.mxu0 %v256
    %408 = vmatprep.subr.bf16.mxu0 %v259
    %409 = vmatpush1.bf16.msra.mxu0 %v258
    %410 = vmatprep.subr.bf16.mxu0 %v261
    %411 = vmatpush1.bf16.msra.mxu0 %v260
    %412 = vmatprep.subr.bf16.mxu0 %v263
    %413 = vmatpush1.bf16.msra.mxu0 %v262
    %414 = vmatprep.subr.bf16.mxu0 %v265
    %415 = vmatpush1.bf16.msra.mxu0 %v264
    %416 = vmatprep.subr.bf16.mxu0 %v267
    %417 = vmatpush1.bf16.msra.mxu0 %v266
    %418 = vmatprep.subr.bf16.mxu0 %v269
    %419 = vmatpush1.bf16.msra.mxu0 %v268
    %420 = vmatprep.mubr.bf16.mxu0 %v107
    %421 = vmatmul.mubr.bf16.gmra.mrb[0].mxu0 %v106
    %v422 = vpop.f32.mrb[0].mxu0
    %v423 = vadd.f32 %v380, %v422
    %v424 = vpop.f32.mrb[0].mxu0
    %v425 = vadd.f32 %v382, %v424
    %v426 = vpop.f32.mrb[0].mxu0
    %v427 = vadd.f32 %v384, %v426
    %v428 = vpop.f32.mrb[0].mxu0
    %v429 = vadd.f32 %v386, %v428
    %430 = vdwg.mxu0
    %431 = vmatprep.subr.bf16.mxu0 %v271
    %432 = vmatpush1.bf16.msra.mxu0 %v270
    %433 = vmatprep.subr.bf16.mxu0 %v273
    %434 = vmatpush1.bf16.msra.mxu0 %v272
    %435 = vmatprep.subr.bf16.mxu0 %v275
    %436 = vmatpush1.bf16.msra.mxu0 %v274
    %437 = vmatprep.subr.bf16.mxu0 %v277
    %438 = vmatpush1.bf16.msra.mxu0 %v276
    %439 = vmatprep.subr.bf16.mxu0 %v279
    %440 = vmatpush1.bf16.msra.mxu0 %v278
    %441 = vmatprep.subr.bf16.mxu0 %v281
    %442 = vmatpush1.bf16.msra.mxu0 %v280
    %443 = vmatprep.subr.bf16.mxu0 %v283
    %444 = vmatpush1.bf16.msra.mxu0 %v282
    %445 = vmatprep.subr.bf16.mxu0 %v285
    %446 = vmatpush1.bf16.msra.mxu0 %v284
    %447 = vmatprep.subr.bf16.mxu0 %v287
    %448 = vmatpush1.bf16.msra.mxu0 %v286
    %449 = vmatprep.subr.bf16.mxu0 %v289
    %450 = vmatpush1.bf16.msra.mxu0 %v288
    %451 = vmatprep.subr.bf16.mxu0 %v291
    %452 = vmatpush1.bf16.msra.mxu0 %v290
    %453 = vmatprep.subr.bf16.mxu0 %v293
    %454 = vmatpush1.bf16.msra.mxu0 %v292
    %455 = vmatprep.subr.bf16.mxu0 %v295
    %456 = vmatpush1.bf16.msra.mxu0 %v294
    %457 = vmatprep.subr.bf16.mxu0 %v297
    %458 = vmatpush1.bf16.msra.mxu0 %v296
    %459 = vmatprep.subr.bf16.mxu0 %v299
    %460 = vmatpush1.bf16.msra.mxu0 %v298
    %461 = vmatprep.subr.bf16.mxu0 %v301
    %462 = vmatpush1.bf16.msra.mxu0 %v300
    %463 = vmatprep.mubr.bf16.mxu0 %v109
    %464 = vmatmul.mubr.bf16.gmra.mrb[0].mxu0 %v108
    %v465 = vpop.f32.mrb[0].mxu0
    %v466 = vadd.f32 %v423, %v465
    %v467 = vpop.f32.mrb[0].mxu0
    %v468 = vadd.f32 %v425, %v467
    %v469 = vpop.f32.mrb[0].mxu0
    %v470 = vadd.f32 %v427, %v469
    %v471 = vpop.f32.mrb[0].mxu0
    %v472 = vadd.f32 %v429, %v471
    %473 = vdwg.mxu0
    %v474 = vld [vmem:[%s2] sm:$0x3]
    %v476 = vlaneseq
    %v477 = vshrl.u32 %v476, 7
    %v478 = vsub.s32 0, %v477
    %v479 = vrot.slane %v474, %v478
    %v480 = vlaneseq
    %v481 = vshrl.u32 %v480, 7
    %v482 = vsub.s32 1, %v481
    %v483 = vrot.slane %v474, %v482
    %v486 = vmul.f32 %v466, %v479
    %v487 = vmul.f32 %v468, %v483
    %v488 = vmul.f32 %v470, %v479
    %v489 = vmul.f32 %v472, %v483
    %v490 = vld [vmem:[%s3] sm:$0x3]
    %v492 = vlaneseq
    %v493 = vshrl.u32 %v492, 7
    %v494 = vsub.s32 0, %v493
    %v495 = vrot.slane %v490, %v494
    %v496 = vlaneseq
    %v497 = vshrl.u32 %v496, 7
    %v498 = vsub.s32 1, %v497
    %v499 = vrot.slane %v490, %v498
    %v502 = vadd.f32 %v486, %v495
    %v503 = vadd.f32 %v487, %v499
    %v504 = vadd.f32 %v488, %v495
    %v505 = vadd.f32 %v489, %v499
    %v506 = vmax.f32 %v502, 0.0
    %v507 = vmax.f32 %v503, 0.0
    %v508 = vmax.f32 %v504, 0.0
    %v509 = vmax.f32 %v505, 0.0
    %v510 = vpack.c.bf16 %v508, %v506
    %v511 = vpack.c.bf16 %v509, %v507
    %v512 = vld [vmem:[#allocation7] sm:$0xf]
    %v513 = vld [vmem:[#allocation7 + $0x4] sm:$0xf]
    %v514 = vld [vmem:[#allocation7 + $0x8] sm:$0xf]
    %v515 = vld [vmem:[#allocation7 + $0xc] sm:$0xf]
    %v516 = vld [vmem:[#allocation7 + $0x10] sm:$0xf]
    %v517 = vld [vmem:[#allocation7 + $0x14] sm:$0xf]
    %v518 = vld [vmem:[#allocation7 + $0x18] sm:$0xf]
    %v519 = vld [vmem:[#allocation7 + $0x1c] sm:$0xf]
    %v520 = vld [vmem:[#allocation7 + $0x20] sm:$0xf]
    %v521 = vld [vmem:[#allocation7 + $0x24] sm:$0xf]
    %v522 = vld [vmem:[#allocation7 + $0x28] sm:$0xf]
    %v523 = vld [vmem:[#allocation7 + $0x2c] sm:$0xf]
    %v524 = vld [vmem:[#allocation7 + $0x30] sm:$0xf]
    %v525 = vld [vmem:[#allocation7 + $0x34] sm:$0xf]
    %v526 = vld [vmem:[#allocation7 + $0x38] sm:$0xf]
    %v527 = vld [vmem:[#allocation7 + $0x3c] sm:$0xf]
    %v528 = vld [vmem:[#allocation7 + $0x40] sm:$0xf]
    %v529 = vld [vmem:[#allocation7 + $0x44] sm:$0xf]
    %v530 = vld [vmem:[#allocation7 + $0x48] sm:$0xf]
    %v531 = vld [vmem:[#allocation7 + $0x4c] sm:$0xf]
    %v532 = vld [vmem:[#allocation7 + $0x50] sm:$0xf]
    %v533 = vld [vmem:[#allocation7 + $0x54] sm:$0xf]
    %v534 = vld [vmem:[#allocation7 + $0x58] sm:$0xf]
    %v535 = vld [vmem:[#allocation7 + $0x5c] sm:$0xf]
    %v536 = vld [vmem:[#allocation7 + $0x60] sm:$0xf]
    %v537 = vld [vmem:[#allocation7 + $0x64] sm:$0xf]
    %v538 = vld [vmem:[#allocation7 + $0x68] sm:$0xf]
    %v539 = vld [vmem:[#allocation7 + $0x6c] sm:$0xf]
    %v540 = vld [vmem:[#allocation7 + $0x70] sm:$0xf]
    %v541 = vld [vmem:[#allocation7 + $0x74] sm:$0xf]
    %v542 = vld [vmem:[#allocation7 + $0x78] sm:$0xf]
    %v543 = vld [vmem:[#allocation7 + $0x7c] sm:$0xf]
    %v544 = vld [vmem:[%s5] sm:$0x1]
    %v546 = vlaneseq
    %v547 = vshrl.u32 %v546, 7
    %v548 = vsub.s32 0, %v547
    %v549 = vrot.slane %v544, %v548
    %v583 = vunpack.c.l.b16 %v512
    %v584 = vunpack.c.l.b16 %v513
    %v585 = vunpack.c.l.b16 %v514
    %v586 = vunpack.c.l.b16 %v515
    %v587 = vunpack.c.l.b16 %v516
    %v588 = vunpack.c.l.b16 %v517
    %v589 = vunpack.c.l.b16 %v518
    %v590 = vunpack.c.l.b16 %v519
    %v591 = vunpack.c.l.b16 %v520
    %v592 = vunpack.c.l.b16 %v521
    %v593 = vunpack.c.l.b16 %v522
    %v594 = vunpack.c.l.b16 %v523
    %v595 = vunpack.c.l.b16 %v524
    %v596 = vunpack.c.l.b16 %v525
    %v597 = vunpack.c.l.b16 %v526
    %v598 = vunpack.c.l.b16 %v527
    %v599 = vunpack.c.l.b16 %v528
    %v600 = vunpack.c.l.b16 %v529
    %v601 = vunpack.c.l.b16 %v530
    %v602 = vunpack.c.l.b16 %v531
    %v603 = vunpack.c.l.b16 %v532
    %v604 = vunpack.c.l.b16 %v533
    %v605 = vunpack.c.l.b16 %v534
    %v606 = vunpack.c.l.b16 %v535
    %v607 = vunpack.c.l.b16 %v536
    %v608 = vunpack.c.l.b16 %v537
    %v609 = vunpack.c.l.b16 %v538
    %v610 = vunpack.c.l.b16 %v539
    %v611 = vunpack.c.l.b16 %v540
    %v612 = vunpack.c.l.b16 %v541
    %v613 = vunpack.c.l.b16 %v542
    %v614 = vunpack.c.l.b16 %v543
    %v615 = vpack.c.b16 %v584, %v583
    %v616 = vpack.c.b16 %v586, %v585
    %v617 = vpack.c.b16 %v588, %v587
    %v618 = vpack.c.b16 %v590, %v589
    %v619 = vpack.c.b16 %v592, %v591
    %v620 = vpack.c.b16 %v594, %v593
    %v621 = vpack.c.b16 %v596, %v595
    %v622 = vpack.c.b16 %v598, %v597
    %v623 = vpack.c.b16 %v600, %v599
    %v624 = vpack.c.b16 %v602, %v601
    %v625 = vpack.c.b16 %v604, %v603
    %v626 = vpack.c.b16 %v606, %v605
    %v627 = vpack.c.b16 %v608, %v607
    %v628 = vpack.c.b16 %v610, %v609
    %v629 = vpack.c.b16 %v612, %v611
    %v630 = vpack.c.b16 %v614, %v613
    %647 = vmatprep.subr.bf16.mxu0 0
    %648 = vmatpush1.bf16.msra.mxu0 %v615
    %649 = vmatprep.subr.bf16.mxu0 0
    %650 = vmatpush1.bf16.msra.mxu0 %v616
    %651 = vmatprep.subr.bf16.mxu0 0
    %652 = vmatpush1.bf16.msra.mxu0 %v617
    %653 = vmatprep.subr.bf16.mxu0 0
    %654 = vmatpush1.bf16.msra.mxu0 %v618
    %655 = vmatprep.subr.bf16.mxu0 0
    %656 = vmatpush1.bf16.msra.mxu0 %v619
    %657 = vmatprep.subr.bf16.mxu0 0
    %658 = vmatpush1.bf16.msra.mxu0 %v620
    %659 = vmatprep.subr.bf16.mxu0 0
    %660 = vmatpush1.bf16.msra.mxu0 %v621
    %661 = vmatprep.subr.bf16.mxu0 0
    %662 = vmatpush1.bf16.msra.mxu0 %v622
    %663 = vmatprep.subr.bf16.mxu0 0
    %664 = vmatpush1.bf16.msra.mxu0 %v623
    %665 = vmatprep.subr.bf16.mxu0 0
    %666 = vmatpush1.bf16.msra.mxu0 %v624
    %667 = vmatprep.subr.bf16.mxu0 0
    %668 = vmatpush1.bf16.msra.mxu0 %v625
    %669 = vmatprep.subr.bf16.mxu0 0
    %670 = vmatpush1.bf16.msra.mxu0 %v626
    %671 = vmatprep.subr.bf16.mxu0 0
    %672 = vmatpush1.bf16.msra.mxu0 %v627
    %673 = vmatprep.subr.bf16.mxu0 0
    %674 = vmatpush1.bf16.msra.mxu0 %v628
    %675 = vmatprep.subr.bf16.mxu0 0
    %676 = vmatpush1.bf16.msra.mxu0 %v629
    %677 = vmatprep.subr.bf16.mxu0 0
    %678 = vmatpush1.bf16.msra.mxu0 %v630
    %679 = vmatprep.mubr.bf16.mxu0 %v511
    %680 = vmatmul.mubr.bf16.gmra.mrb[0].mxu0 %v510
    %v681 = vpop.f32.mrb[0].mxu0
    %v682 = vadd.f32 %v549, %v681
    %v683 = vpop.f32.mrb[0].mxu0
    %v684 = vpop.f32.mrb[0].mxu0
    %v685 = vadd.f32 %v549, %v684
    %v686 = vpop.f32.mrb[0].mxu0
    %687 = vdwg.mxu0
    %v688 = vmax.f32 %v682, 0.0
    %v689 = vmax.f32 %v685, 0.0
    %v690 = vpack.c.bf16 %v689, %v688
    %v691 = vld [vmem:[#allocation8] sm:$0xf]
    %v692 = vld [vmem:[#allocation8 + $0x4] sm:$0xf]
    %v693 = vld [vmem:[#allocation8 + $0x8] sm:$0xf]
    %v694 = vld [vmem:[#allocation8 + $0xc] sm:$0xf]
    %v695 = vld [vmem:[#allocation8 + $0x10] sm:$0xf]
    %v696 = vld [vmem:[#allocation8 + $0x14] sm:$0xf]
    %v697 = vld [vmem:[#allocation8 + $0x18] sm:$0xf]
    %v698 = vld [vmem:[#allocation8 + $0x1c] sm:$0xf]
    %v699 = vld [vmem:[#allocation8 + $0x20] sm:$0xf]
    %v700 = vld [vmem:[#allocation8 + $0x24] sm:$0xf]
    %v701 = vld [vmem:[#allocation8 + $0x28] sm:$0xf]
    %v702 = vld [vmem:[#allocation8 + $0x2c] sm:$0xf]
    %v703 = vld [vmem:[#allocation8 + $0x30] sm:$0xf]
    %v704 = vld [vmem:[#allocation8 + $0x34] sm:$0xf]
    %v705 = vld [vmem:[#allocation8 + $0x38] sm:$0xf]
    %v706 = vld [vmem:[#allocation8 + $0x3c] sm:$0xf]
    %v707 = vld [vmem:[%s7] sm:$0x1]
    %v709 = vlaneseq
    %v710 = vshrl.u32 %v709, 7
    %v711 = vsub.s32 0, %v710
    %v712 = vrot.slane %v707, %v711
    %v730 = vunpack.c.l.b16 %v691
    %v731 = vunpack.c.l.b16 %v692
    %v732 = vunpack.c.l.b16 %v693
    %v733 = vunpack.c.l.b16 %v694
    %v734 = vunpack.c.l.b16 %v695
    %v735 = vunpack.c.l.b16 %v696
    %v736 = vunpack.c.l.b16 %v697
    %v737 = vunpack.c.l.b16 %v698
    %v738 = vunpack.c.l.b16 %v699
    %v739 = vunpack.c.l.b16 %v700
    %v740 = vunpack.c.l.b16 %v701
    %v741 = vunpack.c.l.b16 %v702
    %v742 = vunpack.c.l.b16 %v703
    %v743 = vunpack.c.l.b16 %v704
    %v744 = vunpack.c.l.b16 %v705
    %v745 = vunpack.c.l.b16 %v706
    %v746 = vpack.c.b16 %v731, %v730
    %v747 = vpack.c.b16 %v733, %v732
    %v748 = vpack.c.b16 %v735, %v734
    %v749 = vpack.c.b16 %v737, %v736
    %v750 = vpack.c.b16 %v739, %v738
    %v751 = vpack.c.b16 %v741, %v740
    %v752 = vpack.c.b16 %v743, %v742
    %v753 = vpack.c.b16 %v745, %v744
    %762 = vmatprep.subr.bf16.mxu0 0
    %763 = vmatpush1.bf16.msra.mxu0 %v746
    %764 = vmatprep.subr.bf16.mxu0 0
    %765 = vmatpush1.bf16.msra.mxu0 %v747
    %766 = vmatprep.subr.bf16.mxu0 0
    %767 = vmatpush1.bf16.msra.mxu0 %v748
    %768 = vmatprep.subr.bf16.mxu0 0
    %769 = vmatpush1.bf16.msra.mxu0 %v749
    %770 = vmatprep.subr.bf16.mxu0 0
    %771 = vmatpush1.bf16.msra.mxu0 %v750
    %772 = vmatprep.subr.bf16.mxu0 0
    %773 = vmatpush1.bf16.msra.mxu0 %v751
    %774 = vmatprep.subr.bf16.mxu0 0
    %775 = vmatpush1.bf16.msra.mxu0 %v752
    %776 = vmatprep.subr.bf16.mxu0 0
    %777 = vmatpush1.bf16.msra.mxu0 %v753
    %778 = vmatprep.subr.bf16.mxu0 0
    %779 = vmatpush1.bf16.msra.mxu0 0
    %780 = vmatprep.subr.bf16.mxu0 0
    %781 = vmatpush1.bf16.msra.mxu0 0
    %782 = vmatprep.subr.bf16.mxu0 0
    %783 = vmatpush1.bf16.msra.mxu0 0
    %784 = vmatprep.subr.bf16.mxu0 0
    %785 = vmatpush1.bf16.msra.mxu0 0
    %786 = vmatprep.subr.bf16.mxu0 0
    %787 = vmatpush1.bf16.msra.mxu0 0
    %788 = vmatprep.subr.bf16.mxu0 0
    %789 = vmatpush1.bf16.msra.mxu0 0
    %790 = vmatprep.subr.bf16.mxu0 0
    %791 = vmatpush1.bf16.msra.mxu0 0
    %792 = vmatprep.subr.bf16.mxu0 0
    %793 = vmatpush1.bf16.msra.mxu0 0
    %794 = vmatprep.mubr.bf16.mxu0 0
    %795 = vmatmul.mubr.bf16.gmra.mrb[0].mxu0 %v690
    %v796 = vpop.f32.mrb[0].mxu0
    %v797 = vadd.f32 %v712, %v796
    %v798 = vpop.f32.mrb[0].mxu0
    %v799 = vpop.f32.mrb[0].mxu0
    %v800 = vadd.f32 %v712, %v799
    %v801 = vpop.f32.mrb[0].mxu0
    %802 = vdwg.mxu0
    %803 = vst [vmem:[#allocation10] sm:$0xff] %v797
    %804 = vst [vmem:[#allocation10 + $0x8] sm:$0xff] %v800
    // Predicated region
    $region50: #{tpu_custom_call.1} parent=1 // pred_check
      _
    $region51: #{tpu_custom_call.1} parent=1 // pred_check_branch
      %806 = sbr.rel (0) target = $region53
    $region52: #{tpu_custom_call.1} parent=1 // pred_region
      %s808 = ssub.s32 256, 256
      %809 = vsyncadd [#allocation4], %s808
      %s810 = sshll.u32 [#allocation10], 4
      %s811 = int_to_ptr.vmem [resolvable:$true] %s810
      %816 = dma.vmem_to_hbm [thread:$0]  %s811, 256, %s8, [#allocation4], 128, 128, 8
    $region53: #{tpu_custom_call.1} parent=1 // pred_fallthru
      _
    // Predicated region
    $region54: #{tpu_custom_call.1} parent=1 // pred_check
      _
    $region55: #{tpu_custom_call.1} parent=1 // pred_check_branch
      %818 = sbr.rel (0) target = $region57
    $region56: #{tpu_custom_call.1} parent=1 // pred_region
      %819 = dma.done [#allocation4], 256
    $region57: #{tpu_custom_call.1} parent=1 // pred_fallthru
      _
    %820 = vsyncpa [#allocation3], 1
    %821 = vsyncpa [#allocation6], 1
    %822 = vsyncpa [#allocation9], 1
    %823 = vsyncpa [#allocation4], 1

</llo_original>
